<compile_context>
chip_gen: v6e
topology: v6e:2x2x1
jax: 0.10.0
libtpu: 0.0.40
codegen_flags: <defaults>
</compile_context>

<pallas_src>
import functools

import jax
import jax.numpy as jnp
from jax.experimental import pallas as pl
from jax.experimental.pallas import tpu as pltpu


def _round_up(x, m):
    return (x + m - 1) // m * m


def _shortcut1d_kernel(x_ref, w_ref, shift_ref, res_ref, o_ref, *,
                       b_blk, use_mxu, approx_gelu):
    # x_ref:     (b_blk, Cin,  TL)  input tile (NCL kept, L on the 128-lane axis)
    # w_ref:     (Cout, Cin)        1x1-conv weight with BN scale folded in (f32)
    # shift_ref: (Cout, 1)          beta - running_mean * scale             (f32)
    # res_ref:   (b_blk, Cout, TL)  residual tile
    # o_ref:     (b_blk, Cout, TL)  output tile (lane-dense stores)
    w = w_ref[...]
    shift = shift_ref[...]
    for b in range(b_blk):                       # static unroll over batch rows
        x = x_ref[b].astype(jnp.float32)         # (Cin, TL)
        if use_mxu:
            y = jnp.dot(w, x, preferred_element_type=jnp.float32,
                        precision=jax.lax.Precision.HIGHEST)        # (Cout, TL)
        else:
            # tiny-Cin path (Cin in {1,2,3}): VPU multiply-add
            y = w[:, 0:1] * x[0:1, :]
            for c in range(1, w.shape[1]):
                y = y + w[:, c:c + 1] * x[c:c + 1, :]
        y = y + shift                            # folded BatchNorm shift
        y = y + res_ref[b].astype(jnp.float32)   # residual add
        if approx_gelu:
            # tanh-approx GELU: tanh runs in the EUP slot (VALU relief on v7x)
            c0 = jnp.float32(0.7978845608028654)     # sqrt(2/pi)
            g = 0.5 * y * (1.0 + jnp.tanh(c0 * (y + 0.044715 * y * y * y)))
        else:
            # exact erf GELU (PyTorch nn.GELU() default, approximate='none')
            g = 0.5 * y * (1.0 + jax.lax.erf(y * jnp.float32(0.7071067811865476)))
        o_ref[b] = g.astype(o_ref.dtype)


def shortcut1d(x, residual, weight, gamma, beta, running_mean, running_var,
               eps=1e-5, approximate_gelu=False, alias_residual=False,
               tl=None, b_blk=None):
    """Fused Conv1d(k=1, bias=False) -> BatchNorm1d (eval) -> +residual -> GELU.

    x:        (N, Cin,  L)   PyTorch NCL layout (kept; no transposes, no padding)
    residual: (N, Cout, L)
    weight:   (Cout, Cin, 1)
    """
    N, Cin, L = x.shape
    Cout = weight.shape[0]
    assert residual.shape == (N, Cout, L)

    # ---- fold inference-mode BN into the conv weight (scale) + additive shift ----
    scale = (gamma / jnp.sqrt(running_var + eps)).astype(jnp.float32)          # (Cout,)
    shift = (beta.astype(jnp.float32) - running_mean.astype(jnp.float32) * scale)
    w_folded = weight[:, :, 0].astype(jnp.float32) * scale[:, None]            # (Cout, Cin)
    shift = shift.reshape(Cout, 1)

    # ---- generation-aware tile selection (no wrapper pads / slices) ----
    in_isz = jnp.dtype(x.dtype).itemsize
    res_isz = jnp.dtype(residual.dtype).itemsize
    bytes_per_len = Cin * in_isz + Cout * (res_isz + in_isz)   # x + res + out per row per L
    try:
        vmem_cap = int(pltpu.get_tpu_info().vmem_capacity_bytes)
    except Exception:
        vmem_cap = 64 * 1024 * 1024        # conservative fallback (v7x physical)
    budget = vmem_cap // 4                 # double-buffered working-set cap

    if tl is None:
        tl_cap = max(128, min(4096, (budget // (2 * bytes_per_len)) // 128 * 128))
        if _round_up(L, 128) <= tl_cap:
            tl = L                         # whole length in one (full-dim) tile
        else:
            tl = tl_cap                    # 128-aligned tile; ragged tail masked by Pallas
    num_l = pl.cdiv(L, tl)

    if b_blk is None:
        b_blk = 1
        if num_l == 1 and N > 1:
            # amortize per-step pipeline overhead over several batch rows, but keep
            # >= 2 grid steps so both v7x TensorCores get work
            max_b = max(1, min(8, N, budget // max(1, 2 * tl * bytes_per_len)))
            for cand in range(max_b, 0, -1):
                if N % cand == 0 and N // cand >= 2:
                    b_blk = cand
                    break
    grid = (pl.cdiv(N, b_blk), num_l)

    use_mxu = Cin >= 4   # VPU path only for very narrow contractions

    vmem_need = 2 * b_blk * tl * bytes_per_len + 4 * (Cout * Cin + Cout)
    vmem_limit = int(min(vmem_cap * 3 // 4,
                         max(32 * 1024 * 1024, vmem_need + (4 << 20))))

    cost = pl.CostEstimate(
        flops=2 * N * L * Cin * Cout,
        transcendentals=N * L * Cout,
        bytes_accessed=(N * Cin * L * in_isz
                        + N * Cout * L * (res_isz + in_isz)
                        + 4 * (Cout * Cin + Cout)),
    )

    kernel = functools.partial(_shortcut1d_kernel, b_blk=b_blk, use_mxu=use_mxu,
                               approx_gelu=approximate_gelu)

    aliases = {}
    if alias_residual and residual.dtype == x.dtype:
        aliases = {3: 0}   # reuse the residual HBM buffer for the output

    return pl.pallas_call(
        kernel,
        out_shape=jax.ShapeDtypeStruct((N, Cout, L), x.dtype),
        grid=grid,
        in_specs=[
            pl.BlockSpec((b_blk, Cin, tl), lambda n, l: (n, 0, l)),
            pl.BlockSpec((Cout, Cin), lambda n, l: (0, 0)),
            pl.BlockSpec((Cout, 1), lambda n, l: (0, 0)),
            pl.BlockSpec((b_blk, Cout, tl), lambda n, l: (n, 0, l)),
        ],
        out_specs=pl.BlockSpec((b_blk, Cout, tl), lambda n, l: (n, 0, l)),
        compiler_params=pltpu.CompilerParams(
            dimension_semantics=("parallel", "parallel"),
            vmem_limit_bytes=vmem_limit),
        cost_estimate=cost,
        input_output_aliases=aliases,
    )(x, w_folded, shift, residual)


if __name__ == "__main__":
    key = jax.random.PRNGKey(0)

    def make_case(k, N, Cin, Cout, L):
        ks = jax.random.split(k, 7)
        x = jax.random.normal(ks[0], (N, Cin, L), dtype=jnp.float32)
        residual = jax.random.normal(ks[1], (N, Cout, L), dtype=jnp.float32)
        weight = jax.random.normal(ks[2], (Cout, Cin, 1), dtype=jnp.float32) * 0.1
        gamma = 1.0 + 0.1 * jax.random.normal(ks[3], (Cout,), dtype=jnp.float32)
        beta = 0.1 * jax.random.normal(ks[4], (Cout,), dtype=jnp.float32)
        rm = 0.05 * jax.random.normal(ks[5], (Cout,), dtype=jnp.float32)
        rv = 1.0 + 0.1 * jnp.abs(jax.random.normal(ks[6], (Cout,), dtype=jnp.float32))
        return x, residual, weight, gamma, beta, rm, rv

    def reference(x, residual, weight, gamma, beta, rm, rv, eps=1e-5):
        conv_out = jnp.einsum("ncl,oc->nol", x, weight[:, :, 0],
                              precision=jax.lax.Precision.HIGHEST)
        bn = (conv_out - rm[None, :, None]) / jnp.sqrt(rv[None, :, None] + eps)
        bn = bn * gamma[None, :, None] + beta[None, :, None]
        y = bn + residual
        return 0.5 * y * (1.0 + jax.lax.erf(y * jnp.float32(0.7071067811865476)))

    k1, k2 = jax.random.split(key)

    # MXU path (Cin >= 4): batch=2, channels 4 -> 8, length 16
    args = make_case(k1, 2, 4, 8, 16)
    out = shortcut1d(*args)
    jax.block_until_ready(out)
    assert out.shape == (2, 8, 16), out.shape
    ref = reference(*args)
    assert jnp.allclose(out, ref, atol=1e-5, rtol=1e-5), float(jnp.max(jnp.abs(out - ref)))

    # VPU path (tiny Cin, matches the network's first shortcut in_channels=1)
    args = make_case(k2, 2, 1, 16, 16)
    out = shortcut1d(*args)
    jax.block_until_ready(out)
    assert out.shape == (2, 16, 16), out.shape
    ref = reference(*args)
    assert jnp.allclose(out, ref, atol=1e-5, rtol=1e-5), float(jnp.max(jnp.abs(out - ref)))

    print("KERNEL_OK")
</pallas_src>

<mosaic_0001>
module attributes {stable_mosaic.version = 11 : i64} {
  func.func @_shortcut1d_kernel(%arg0: i32, %arg1: i32, %arg2: memref<1x4x16xf32, #tpu.memory_space<vmem>>, %arg3: memref<8x4xf32, #tpu.memory_space<vmem>>, %arg4: memref<8x1xf32, #tpu.memory_space<vmem>>, %arg5: memref<1x8x16xf32, #tpu.memory_space<vmem>>, %arg6: memref<1x8x16xf32, #tpu.memory_space<vmem>>) attributes {dimension_semantics = [#tpu.dimension_semantics<parallel>, #tpu.dimension_semantics<parallel>], iteration_bounds = array<i64: 2, 1>, scalar_prefetch = 0 : i64, scratch_operands = 0 : i64, tpu.core_type = #tpu.core_type<tc>, window_params = [{transform_indices = @transform_0, window_bounds = array<i64: 1, 4, 16>}, {pipeline_mode = #tpu.pipeline_mode<synchronous>, transform_indices = @transform_1, window_bounds = array<i64: 8, 4>}, {pipeline_mode = #tpu.pipeline_mode<synchronous>, transform_indices = @transform_2, window_bounds = array<i64: 8, 1>}, {transform_indices = @transform_3, window_bounds = array<i64: 1, 8, 16>}, {transform_indices = @transform_4, window_bounds = array<i64: 1, 8, 16>}]} {
    %c0 = arith.constant 0 : index
    %c0_0 = arith.constant 0 : index
    %0 = vector.load %arg3[%c0, %c0_0] : memref<8x4xf32, #tpu.memory_space<vmem>>, vector<8x4xf32>
    %c0_1 = arith.constant 0 : index
    %c0_2 = arith.constant 0 : index
    %1 = vector.load %arg4[%c0_1, %c0_2] : memref<8x1xf32, #tpu.memory_space<vmem>>, vector<8x1xf32>
    %c0_3 = arith.constant 0 : index
    %c0_4 = arith.constant 0 : index
    %c0_5 = arith.constant 0 : index
    %2 = vector.load %arg2[%c0_3, %c0_4, %c0_5] : memref<1x4x16xf32, #tpu.memory_space<vmem>>, vector<1x4x16xf32>
    %3 = vector.shape_cast %2 : vector<1x4x16xf32> to vector<4x16xf32>
    %cst = arith.constant dense<0.000000e+00> : vector<8x16xf32>
    %4 = tpu.matmul %0, %3, %cst {dimension_numbers = #tpu.dot_dimension_numbers<[1], [0], [0], [1], [0, 0, 1, 1], [], []>, precision = #tpu.contract_precision<fp32>} : vector<8x4xf32>, vector<4x16xf32>, vector<8x16xf32> -> vector<8x16xf32>
    %5 = vector.broadcast %1 : vector<8x1xf32> to vector<8x16xf32>
    %6 = arith.addf %4, %5 : vector<8x16xf32>
    %c0_6 = arith.constant 0 : index
    %c0_7 = arith.constant 0 : index
    %c0_8 = arith.constant 0 : index
    %7 = vector.load %arg5[%c0_6, %c0_7, %c0_8] : memref<1x8x16xf32, #tpu.memory_space<vmem>>, vector<1x8x16xf32>
    %8 = vector.shape_cast %7 : vector<1x8x16xf32> to vector<8x16xf32>
    %9 = arith.addf %6, %8 : vector<8x16xf32>
    %cst_9 = arith.constant 5.000000e-01 : f32
    %10 = vector.broadcast %cst_9 : f32 to vector<8x16xf32>
    %11 = arith.mulf %10, %9 : vector<8x16xf32>
    %cst_10 = arith.constant 0.707106769 : f32
    %12 = vector.broadcast %cst_10 : f32 to vector<8x16xf32>
    %13 = arith.mulf %9, %12 : vector<8x16xf32>
    %14 = math.erf %13 : vector<8x16xf32>
    %cst_11 = arith.constant 1.000000e+00 : f32
    %15 = vector.broadcast %cst_11 : f32 to vector<8x16xf32>
    %16 = arith.addf %15, %14 : vector<8x16xf32>
    %17 = arith.mulf %11, %16 : vector<8x16xf32>
    %c0_12 = arith.constant 0 : index
    %c0_13 = arith.constant 0 : index
    %c0_14 = arith.constant 0 : index
    %18 = vector.load %arg6[%c0_12, %c0_13, %c0_14] : memref<1x8x16xf32, #tpu.memory_space<vmem>>, vector<1x8x16xf32>
    %19 = vector.shape_cast %18 : vector<1x8x16xf32> to vector<8x16xf32>
    %20 = vector.shape_cast %17 : vector<8x16xf32> to vector<1x8x16xf32>
    tpu.vector_store %arg6[%c0_12, %c0_13, %c0_14], %20 {strides = array<i32>} : memref<1x8x16xf32, #tpu.memory_space<vmem>>, vector<1x8x16xf32>,
    return
  }
  func.func @transform_0(%arg0: i32, %arg1: i32) -> (i32, i32, i32) {
    %c0_i32 = arith.constant 0 : i32
    %c0_i32_0 = arith.constant 0 : i32
    return %arg0, %c0_i32, %arg1 : i32, i32, i32
  }
  func.func @transform_1(%arg0: i32, %arg1: i32) -> (i32, i32) {
    %c0_i32 = arith.constant 0 : i32
    %c0_i32_0 = arith.constant 0 : i32
    %c0_i32_1 = arith.constant 0 : i32
    return %c0_i32, %c0_i32_0 : i32, i32
  }
  func.func @transform_2(%arg0: i32, %arg1: i32) -> (i32, i32) {
    %c0_i32 = arith.constant 0 : i32
    %c0_i32_0 = arith.constant 0 : i32
    %c0_i32_1 = arith.constant 0 : i32
    return %c0_i32, %c0_i32_0 : i32, i32
  }
  func.func @transform_3(%arg0: i32, %arg1: i32) -> (i32, i32, i32) {
    %c0_i32 = arith.constant 0 : i32
    %c0_i32_0 = arith.constant 0 : i32
    return %arg0, %c0_i32, %arg1 : i32, i32, i32
  }
  func.func @transform_4(%arg0: i32, %arg1: i32) -> (i32, i32, i32) {
    %c0_i32 = arith.constant 0 : i32
    %c0_i32_0 = arith.constant 0 : i32
    return %arg0, %c0_i32, %arg1 : i32, i32, i32
  }
}

</mosaic_0001>

<llo_original>
// kernel: tpu_custom_call.1
$region0: #{tpu_custom_call.1}
  #allocation0 [shape = 'u32[]', space=smem, size = 0x4, offset = 0x4, fixed_abs, tag = 'smem constant byte address 0x4 - core index']
  #allocation1 [shape = 'u32[144,128]{1,0:T(1,128)}', space=vmem, size = 0x12000, scoped, tag = 'internal scratch']
  %s0 = inlined_call_operand.vmem [shape: f32[2,4,16], index: 0, kind: input, shape index: {}]
  %s1 = inlined_call_operand.vmem [shape: f32[8,4], index: 1, kind: input, shape index: {}]
  %s2 = inlined_call_operand.vmem [shape: f32[8,1], index: 2, kind: input, shape index: {}]
  %s3 = inlined_call_operand.vmem [shape: f32[2,8,16], index: 3, kind: input, shape index: {}]
  %s4 = inlined_call_operand.hbm [shape: f32[2,8,16], index: 4, kind: output, shape index: {}]
  %s5 = sld [smem:[#allocation0]]
  $region49: #{tpu_custom_call.1} parent=0
    _
  %s7 = ssub.s32 1, %s5
  %s8 = scalar_select 0, %s7, %s5
  $region1: #{tpu_custom_call.1} parent=0
    #allocation2 [shape = 'u8[8192]{0}', space=vmem, size = 0x2000, scoped, tag = 'output window, operand 0']
    #allocation3 [shape = 's32[2]{0}', space=sflag, size = 0x8, scoped, tag = 'scoped memory for tpu_custom_call.1']
    %9 = vsyncpa [#allocation3], 0
    %s10 = scalar_lea.sflag [#allocation3], 1
    %11 = vsyncpa %s10, 0
    loop: start=0, step=1, limit=4
    $region2: #{tpu_custom_call.1} parent=1 // loop_pre_header
      _
    $region3: #{tpu_custom_call.1} parent=1 // loop_header
      %s13 = sphi 0, %s17
      %p14 = scmp.ge.s32.totalorder %s13, 4
      %s20 = sphi 0, %s32
      %s21 = sphi 0, %s28
      %s22 = sphi 0, %s20
      %s23 = sphi 0, %s21
      %s24 = sphi 0, %s22
      %s25 = sphi 0, %s23
      %s37 = sphi 0, %s39
      %s40 = sphi 0, %s37
      %s41 = sphi 0, %s40
      %s57 = sphi 0, %s41
      %s61 = sphi 0, %s61
      %s63 = sphi 0, %s61
      %s64 = sphi 0, %s63
      %s78 = sphi 0, %s64
      %s82 = sphi 0, %s82
      %s84 = sphi 0, %s82
      %s85 = sphi 0, %s84
      %s99 = sphi 0, %s85
      %s107 = sphi 0, %s109
      %s110 = sphi 0, %s107
      %s111 = sphi 0, %s110
      %s127 = sphi 0, %s111
      %s135 = sphi 0, %s137
      %s138 = sphi 0, %s135
      %s139 = sphi 0, %s138
      %s155 = sphi 0, %s139
    $region4: #{tpu_custom_call.1} parent=1 // loop_header_branch
      %16 = sbr.rel (%p14) target = $region8
    $region5: #{tpu_custom_call.1} parent=1 // loop_body
      %s18 = ssub.s32 %s13, 1
      %s19 = ssub.s32 %s13, 2
      %s26 = sadd.s32 1, %s21
      %p27 = scmp.ge.s32.totalorder %s26, 1
      %s28 = scalar_select %p27, 0, %s26
      %s29 = sadd.s32 1, %s20
      %s30 = scalar_select %p27, %s29, %s20
      %p31 = scmp.ge.s32.totalorder %s30, 2
      %s32 = scalar_select %p31, 0, %s30
      %s33 = ssub.s32 %s20, %s32
      %s34 = ssub.s32 %s21, %s28
      %s35 = sor.u32 %s33, %s34
      %p36 = scmp.eq.s32.totalorder %s35, 0
      %s38 = sadd.s32 %s37, 1
      %s39 = scalar_select %p36, %s37, %s38
      %p42 = pneg %p36
      %p43 = scmp.eq.s32.totalorder %s13, 1
      %p44 = por %p42, %p43
      %p45 = scmp.ne.s32.totalorder %s37, %s40
      %p46 = scmp.eq.s32.totalorder %s13, 0
      %p47 = por %p45, %p46
      %p48 = scmp.ne.s32.totalorder %s37, %s40
      %p49 = scmp.eq.s32.totalorder %s18, 1
      %p50 = por %p48, %p49
      %p51 = scmp.ne.s32.totalorder %s40, %s41
      %p52 = scmp.eq.s32.totalorder %s18, 0
      %p53 = por %p51, %p52
      %p54 = scmp.ne.s32.totalorder %s40, %s41
      %p55 = scmp.eq.s32.totalorder %s19, 1
      %p56 = por %p54, %p55
      %p58 = scmp.ne.s32.totalorder %s41, %s57
      %p59 = scmp.eq.s32.totalorder %s19, 0
      %p60 = por %p58, %p59
      %s62 = sadd.s32 %s61, 1
      %p65 = scmp.eq.s32.totalorder %s13, 1
      %p66 = scmp.ne.s32.totalorder %s61, %s63
      %p67 = scmp.eq.s32.totalorder %s13, 0
      %p68 = por %p66, %p67
      %p69 = scmp.ne.s32.totalorder %s61, %s63
      %p70 = scmp.eq.s32.totalorder %s18, 1
      %p71 = por %p69, %p70
      %p72 = scmp.ne.s32.totalorder %s63, %s64
      %p73 = scmp.eq.s32.totalorder %s18, 0
      %p74 = por %p72, %p73
      %p75 = scmp.ne.s32.totalorder %s63, %s64
      %p76 = scmp.eq.s32.totalorder %s19, 1
      %p77 = por %p75, %p76
      %p79 = scmp.ne.s32.totalorder %s64, %s78
      %p80 = scmp.eq.s32.totalorder %s19, 0
      %p81 = por %p79, %p80
      %s83 = sadd.s32 %s82, 1
      %p86 = scmp.eq.s32.totalorder %s13, 1
      %p87 = scmp.ne.s32.totalorder %s82, %s84
      %p88 = scmp.eq.s32.totalorder %s13, 0
      %p89 = por %p87, %p88
      %p90 = scmp.ne.s32.totalorder %s82, %s84
      %p91 = scmp.eq.s32.totalorder %s18, 1
      %p92 = por %p90, %p91
      %p93 = scmp.ne.s32.totalorder %s84, %s85
      %p94 = scmp.eq.s32.totalorder %s18, 0
      %p95 = por %p93, %p94
      %p96 = scmp.ne.s32.totalorder %s84, %s85
      %p97 = scmp.eq.s32.totalorder %s19, 1
      %p98 = por %p96, %p97
      %p100 = scmp.ne.s32.totalorder %s85, %s99
      %p101 = scmp.eq.s32.totalorder %s19, 0
      %p102 = por %p100, %p101
      %s103 = ssub.s32 %s20, %s32
      %s104 = ssub.s32 %s21, %s28
      %s105 = sor.u32 %s103, %s104
      %p106 = scmp.eq.s32.totalorder %s105, 0
      %s108 = sadd.s32 %s107, 1
      %s109 = scalar_select %p106, %s107, %s108
      %p112 = pneg %p106
      %p113 = scmp.eq.s32.totalorder %s13, 1
      %p114 = por %p112, %p113
      %p115 = scmp.ne.s32.totalorder %s107, %s110
      %p116 = scmp.eq.s32.totalorder %s13, 0
      %p117 = por %p115, %p116
      %p118 = scmp.ne.s32.totalorder %s107, %s110
      %p119 = scmp.eq.s32.totalorder %s18, 1
      %p120 = por %p118, %p119
      %p121 = scmp.ne.s32.totalorder %s110, %s111
      %p122 = scmp.eq.s32.totalorder %s18, 0
      %p123 = por %p121, %p122
      %p124 = scmp.ne.s32.totalorder %s110, %s111
      %p125 = scmp.eq.s32.totalorder %s19, 1
      %p126 = por %p124, %p125
      %p128 = scmp.ne.s32.totalorder %s111, %s127
      %p129 = scmp.eq.s32.totalorder %s19, 0
      %p130 = por %p128, %p129
      %s131 = ssub.s32 %s20, %s32
      %s132 = ssub.s32 %s21, %s28
      %s133 = sor.u32 %s131, %s132
      %p134 = scmp.eq.s32.totalorder %s133, 0
      %s136 = sadd.s32 %s135, 1
      %s137 = scalar_select %p134, %s135, %s136
      %p140 = pneg %p134
      %p141 = scmp.eq.s32.totalorder %s13, 1
      %p142 = por %p140, %p141
      %p143 = scmp.ne.s32.totalorder %s135, %s138
      %p144 = scmp.eq.s32.totalorder %s13, 0
      %p145 = por %p143, %p144
      %p146 = scmp.ne.s32.totalorder %s135, %s138
      %p147 = scmp.eq.s32.totalorder %s18, 1
      %p148 = por %p146, %p147
      %p149 = scmp.ne.s32.totalorder %s138, %s139
      %p150 = scmp.eq.s32.totalorder %s18, 0
      %p151 = por %p149, %p150
      %p152 = scmp.ne.s32.totalorder %s138, %s139
      %p153 = scmp.eq.s32.totalorder %s19, 1
      %p154 = por %p152, %p153
      %p156 = scmp.ne.s32.totalorder %s139, %s155
      %p157 = scmp.eq.s32.totalorder %s19, 0
      %p158 = por %p156, %p157
      %p159 = scmp.le.s32.totalorder 1, %s13
      %p160 = scmp.lt.s32.totalorder %s13, 3
      %p161 = pnand %p159, %p160
      %p162 = pneg %p161
      // Predicated region
      $region9: #{tpu_custom_call.1} parent=5 // pred_check
        _
      $region10: #{tpu_custom_call.1} parent=5 // pred_check_branch
        %164 = sbr.rel (%p161) target = $region12
      $region11: #{tpu_custom_call.1} parent=5 // pred_region
        %s165 = ssub.s32 %s13, 1
        // Predicated region
        $region13: #{tpu_custom_call.1} parent=11 // pred_check
          %p166 = pneg %p74
        $region14: #{tpu_custom_call.1} parent=11 // pred_check_branch
          %168 = sbr.rel (%p166) target = $region16
        $region15: #{tpu_custom_call.1} parent=11 // pred_region
          _
        $region16: #{tpu_custom_call.1} parent=11 // pred_fallthru
          _
        // Predicated region
        $region17: #{tpu_custom_call.1} parent=11 // pred_check
          %p169 = pneg %p95
        $region18: #{tpu_custom_call.1} parent=11 // pred_check_branch
          %171 = sbr.rel (%p169) target = $region20
        $region19: #{tpu_custom_call.1} parent=11 // pred_region
          _
        $region20: #{tpu_custom_call.1} parent=11 // pred_fallthru
          _
      $region12: #{tpu_custom_call.1} parent=5 // pred_fallthru
        _
      %p172 = scmp.lt.s32.totalorder %s13, 2
      // Predicated region
      $region21: #{tpu_custom_call.1} parent=5 // pred_check
        %p173 = pneg %p172
      $region22: #{tpu_custom_call.1} parent=5 // pred_check_branch
        %175 = sbr.rel (%p173) target = $region24
      $region23: #{tpu_custom_call.1} parent=5 // pred_region
        // Predicated region
        $region25: #{tpu_custom_call.1} parent=23 // pred_check
          %p176 = pneg %p47
        $region26: #{tpu_custom_call.1} parent=23 // pred_check_branch
          %178 = sbr.rel (%p176) target = $region28
        $region27: #{tpu_custom_call.1} parent=23 // pred_region
          %p179 = scmp.lt.s32.totalorder %s20, 1
          %s180 = scalar_select %p179, %s20, 1
          %p181 = scmp.lt.s32.totalorder %s21, 0
          %s182 = scalar_select %p181, %s21, 0
          %s183 = sadd.s32 %s182, %s180
          %s184 = smul.addr %s183, 4
          %s185 = scalar_lea.vmem %s0, %s184
        $region28: #{tpu_custom_call.1} parent=23 // pred_fallthru
          _
        // Predicated region
        $region29: #{tpu_custom_call.1} parent=23 // pred_check
          %p186 = pneg %p117
        $region30: #{tpu_custom_call.1} parent=23 // pred_check_branch
          %188 = sbr.rel (%p186) target = $region32
        $region31: #{tpu_custom_call.1} parent=23 // pred_region
          %p189 = scmp.lt.s32.totalorder %s20, 1
          %s190 = scalar_select %p189, %s20, 1
          %p191 = scmp.lt.s32.totalorder %s21, 0
          %s192 = scalar_select %p191, %s21, 0
          %s193 = sadd.s32 %s192, %s190
          %s194 = smul.addr %s193, 8
          %s195 = scalar_lea.vmem %s3, %s194
        $region32: #{tpu_custom_call.1} parent=23 // pred_fallthru
          _
      $region24: #{tpu_custom_call.1} parent=5 // pred_fallthru
        _
      %p196 = scmp.le.s32.totalorder 1, %s13
      %p197 = scmp.lt.s32.totalorder %s13, 3
      %p198 = pnand %p196, %p197
      %p199 = pneg %p198
      // Predicated region
      $region33: #{tpu_custom_call.1} parent=5 // pred_check
        _
      $region34: #{tpu_custom_call.1} parent=5 // pred_check_branch
        %201 = sbr.rel (%p198) target = $region36
      $region35: #{tpu_custom_call.1} parent=5 // pred_region
        %s202 = ssub.s32 %s13, 1
        %p203 = scmp.lt.s32.totalorder %s22, 1
        %s204 = scalar_select %p203, %s22, 1
        %p205 = scmp.lt.s32.totalorder %s23, 0
        %s206 = scalar_select %p205, %s23, 0
        %s207 = sadd.s32 %s206, %s204
        %s208 = smul.addr %s207, 4
        %s209 = scalar_lea.vmem %s0, %s208
        %p210 = pneg %p53
        %p211 = pneg %p50
        %p212 = pneg %p74
        %p213 = pneg %p71
        %p214 = pneg %p95
        %p215 = pneg %p92
        %p216 = scmp.lt.s32.totalorder %s22, 1
        %s217 = scalar_select %p216, %s22, 1
        %p218 = scmp.lt.s32.totalorder %s23, 0
        %s219 = scalar_select %p218, %s23, 0
        %s220 = sadd.s32 %s219, %s217
        %s221 = smul.addr %s220, 8
        %s222 = scalar_lea.vmem %s3, %s221
        %p223 = pneg %p123
        %p224 = pneg %p120
        %p225 = pneg %p151
        %p226 = pneg %p148
        %s227 = sand.u32 %s138, 1
        %s228 = scalar_lea.sflag [#allocation3], %s227
        %s229 = sand.u32 %s138, 1
        %s230 = smul.addr %s229, 8
        %s231 = scalar_lea.vmem [#allocation2], %s230
        %p232 = scmp.lt.s32.totalorder %s22, 1
        %s233 = scalar_select %p232, %s22, 1
        %p234 = scmp.lt.s32.totalorder %s23, 0
        %s235 = scalar_select %p234, %s23, 0
        %s236 = sadd.s32 %s235, %s233
        %s237 = smul.addr %s236, 4
        %s238 = scalar_lea.vmem %s0, %s237
        %p239 = scmp.lt.s32.totalorder %s22, 1
        %s240 = scalar_select %p239, %s22, 1
        %p241 = scmp.lt.s32.totalorder %s23, 0
        %s242 = scalar_select %p241, %s23, 0
        %s243 = sadd.s32 %s242, %s240
        %s244 = smul.addr %s243, 8
        %s245 = scalar_lea.vmem %s3, %s244
        %v246 = vld [vmem:[%s1] sm:$0xff]
        %v247 = vld [vmem:[%s2] sm:$0xff]
        %v248 = vld [vmem:[%s238] sm:$0xf]
        %250 = vset.pattern.permute.xlu0 0
        %251 = vperm.xlu0 %250, %v247
        %v252 = vpop.permute.xlu0 %251
        %vm254 = vcmask 31744
        %v256 = vsel %vm254, %v246, 0
        %vm258 = vcmask 1043456
        %v260 = vsel %vm258, %v248, 0
        %262 = vmatprep.subr.mxu0 0.0
        %263 = vmatpush1.msra.mxu0 0.0
        %264 = vmatprep.subr.mxu0 0.0
        %265 = vmatpush1.msra.mxu0 0.0
        %266 = vmatprep.subr.mxu0 0.0
        %267 = vmatpush1.msra.mxu0 0.0
        %268 = vmatprep.subr.mxu0 0.0
        %269 = vmatpush1.msra.mxu0 0.0
        %270 = vmatprep.subr.mxu0 0.0
        %271 = vmatpush1.msra.mxu0 0.0
        %272 = vmatprep.subr.mxu0 0.0
        %273 = vmatpush1.msra.mxu0 0.0
        %274 = vmatprep.subr.mxu0 0.0
        %275 = vmatpush1.msra.mxu0 0.0
        %276 = vmatprep.subr.mxu0 0.0
        %277 = vmatpush1.msra.mxu0 0.0
        %278 = vmatprep.subr.mxu0 0.0
        %279 = vmatpush1.msra.mxu0 0.0
        %280 = vmatprep.subr.mxu0 0.0
        %281 = vmatpush1.msra.mxu0 0.0
        %282 = vmatprep.subr.mxu0 0.0
        %283 = vmatpush1.msra.mxu0 0.0
        %284 = vmatprep.subr.mxu0 0.0
        %285 = vmatpush1.msra.mxu0 0.0
        %286 = vmatprep.subr.mxu0 0.0
        %287 = vmatpush1.msra.mxu0 0.0
        %288 = vmatprep.subr.mxu0 0.0
        %289 = vmatpush1.msra.mxu0 0.0
        %290 = vmatprep.subr.mxu0 0.0
        %291 = vmatpush1.msra.mxu0 0.0
        %292 = vmatprep.subr.mxu0 0.0
        %v293 = vand.u32 %v260, 4294901760
        %294 = vmatpush1.msra.mxu0 %v293
        %295 = vmatprep.subr.mxu0 0.0
        %296 = vmatpush2.msra.mxu0 0.0
        %297 = vmatprep.subr.mxu0 0.0
        %298 = vmatpush2.msra.mxu0 0.0
        %299 = vmatprep.subr.mxu0 0.0
        %300 = vmatpush2.msra.mxu0 0.0
        %301 = vmatprep.subr.mxu0 0.0
        %302 = vmatpush2.msra.mxu0 0.0
        %303 = vmatprep.subr.mxu0 0.0
        %304 = vmatpush2.msra.mxu0 0.0
        %305 = vmatprep.subr.mxu0 0.0
        %306 = vmatpush2.msra.mxu0 0.0
        %307 = vmatprep.subr.mxu0 0.0
        %308 = vmatpush2.msra.mxu0 0.0
        %309 = vmatprep.subr.mxu0 0.0
        %310 = vmatpush2.msra.mxu0 0.0
        %311 = vmatprep.subr.mxu0 0.0
        %312 = vmatpush2.msra.mxu0 0.0
        %313 = vmatprep.subr.mxu0 0.0
        %314 = vmatpush2.msra.mxu0 0.0
        %315 = vmatprep.subr.mxu0 0.0
        %316 = vmatpush2.msra.mxu0 0.0
        %317 = vmatprep.subr.mxu0 0.0
        %318 = vmatpush2.msra.mxu0 0.0
        %319 = vmatprep.subr.mxu0 0.0
        %320 = vmatpush2.msra.mxu0 0.0
        %321 = vmatprep.subr.mxu0 0.0
        %322 = vmatpush2.msra.mxu0 0.0
        %323 = vmatprep.subr.mxu0 0.0
        %324 = vmatpush2.msra.mxu0 0.0
        %325 = vmatprep.subr.mxu0 0.0
        %326 = vmatpush2.msra.mxu0 0.0
        %327 = vmatprep.mubr.f32.mxu0 0.0
        %v328 = vand.u32 %v256, 4294901760
        %v329 = vsub.f32 %v256, %v328
        %v330 = vand.u32 %v329, 4294901760
        %v331 = vsub.f32 %v329, %v330
        %v332 = vand.u32 %v331, 4294901760
        %333 = vmatmul.mubr.f32.gmra.mxu0 %v332
        %v334 = vpop.f32.mrf.mxu0
        %v335 = vadd.f32 %v252, %v334
        %v336 = vpop.f32.mrf.mxu0
        %337 = vdwg.mxu0
        %338 = vmatprep.subr.mxu0 0.0
        %339 = vmatpush1.msra.mxu0 0.0
        %340 = vmatprep.subr.mxu0 0.0
        %341 = vmatpush1.msra.mxu0 0.0
        %342 = vmatprep.subr.mxu0 0.0
        %343 = vmatpush1.msra.mxu0 0.0
        %344 = vmatprep.subr.mxu0 0.0
        %345 = vmatpush1.msra.mxu0 0.0
        %346 = vmatprep.subr.mxu0 0.0
        %347 = vmatpush1.msra.mxu0 0.0
        %348 = vmatprep.subr.mxu0 0.0
        %349 = vmatpush1.msra.mxu0 0.0
        %350 = vmatprep.subr.mxu0 0.0
        %351 = vmatpush1.msra.mxu0 0.0
        %352 = vmatprep.subr.mxu0 0.0
        %353 = vmatpush1.msra.mxu0 0.0
        %354 = vmatprep.subr.mxu0 0.0
        %355 = vmatpush1.msra.mxu0 0.0
        %356 = vmatprep.subr.mxu0 0.0
        %357 = vmatpush1.msra.mxu0 0.0
        %358 = vmatprep.subr.mxu0 0.0
        %359 = vmatpush1.msra.mxu0 0.0
        %360 = vmatprep.subr.mxu0 0.0
        %361 = vmatpush1.msra.mxu0 0.0
        %362 = vmatprep.subr.mxu0 0.0
        %363 = vmatpush1.msra.mxu0 0.0
        %364 = vmatprep.subr.mxu0 0.0
        %365 = vmatpush1.msra.mxu0 0.0
        %366 = vmatprep.subr.mxu0 0.0
        %367 = vmatpush1.msra.mxu0 0.0
        %368 = vmatprep.subr.mxu0 0.0
        %v369 = vand.u32 %v260, 4294901760
        %v370 = vsub.f32 %v260, %v369
        %v371 = vand.u32 %v370, 4294901760
        %v372 = vsub.f32 %v370, %v371
        %v373 = vand.u32 %v372, 4294901760
        %374 = vmatpush1.msra.mxu0 %v373
        %375 = vmatprep.subr.mxu0 0.0
        %376 = vmatpush2.msra.mxu0 0.0
        %377 = vmatprep.subr.mxu0 0.0
        %378 = vmatpush2.msra.mxu0 0.0
        %379 = vmatprep.subr.mxu0 0.0
        %380 = vmatpush2.msra.mxu0 0.0
        %381 = vmatprep.subr.mxu0 0.0
        %382 = vmatpush2.msra.mxu0 0.0
        %383 = vmatprep.subr.mxu0 0.0
        %384 = vmatpush2.msra.mxu0 0.0
        %385 = vmatprep.subr.mxu0 0.0
        %386 = vmatpush2.msra.mxu0 0.0
        %387 = vmatprep.subr.mxu0 0.0
        %388 = vmatpush2.msra.mxu0 0.0
        %389 = vmatprep.subr.mxu0 0.0
        %390 = vmatpush2.msra.mxu0 0.0
        %391 = vmatprep.subr.mxu0 0.0
        %392 = vmatpush2.msra.mxu0 0.0
        %393 = vmatprep.subr.mxu0 0.0
        %394 = vmatpush2.msra.mxu0 0.0
        %395 = vmatprep.subr.mxu0 0.0
        %396 = vmatpush2.msra.mxu0 0.0
        %397 = vmatprep.subr.mxu0 0.0
        %398 = vmatpush2.msra.mxu0 0.0
        %399 = vmatprep.subr.mxu0 0.0
        %400 = vmatpush2.msra.mxu0 0.0
        %401 = vmatprep.subr.mxu0 0.0
        %402 = vmatpush2.msra.mxu0 0.0
        %403 = vmatprep.subr.mxu0 0.0
        %404 = vmatpush2.msra.mxu0 0.0
        %405 = vmatprep.subr.mxu0 0.0
        %406 = vmatpush2.msra.mxu0 0.0
        %407 = vmatprep.mubr.f32.mxu0 0.0
        %v408 = vand.u32 %v256, 4294901760
        %409 = vmatmul.mubr.f32.gmra.mxu0 %v408
        %v410 = vpop.f32.mrf.mxu0
        %v411 = vadd.f32 %v335, %v410
        %v412 = vpop.f32.mrf.mxu0
        %413 = vdwg.mxu0
        %414 = vmatprep.subr.mxu0 0.0
        %415 = vmatpush1.msra.mxu0 0.0
        %416 = vmatprep.subr.mxu0 0.0
        %417 = vmatpush1.msra.mxu0 0.0
        %418 = vmatprep.subr.mxu0 0.0
        %419 = vmatpush1.msra.mxu0 0.0
        %420 = vmatprep.subr.mxu0 0.0
        %421 = vmatpush1.msra.mxu0 0.0
        %422 = vmatprep.subr.mxu0 0.0
        %423 = vmatpush1.msra.mxu0 0.0
        %424 = vmatprep.subr.mxu0 0.0
        %425 = vmatpush1.msra.mxu0 0.0
        %426 = vmatprep.subr.mxu0 0.0
        %427 = vmatpush1.msra.mxu0 0.0
        %428 = vmatprep.subr.mxu0 0.0
        %429 = vmatpush1.msra.mxu0 0.0
        %430 = vmatprep.subr.mxu0 0.0
        %431 = vmatpush1.msra.mxu0 0.0
        %432 = vmatprep.subr.mxu0 0.0
        %433 = vmatpush1.msra.mxu0 0.0
        %434 = vmatprep.subr.mxu0 0.0
        %435 = vmatpush1.msra.mxu0 0.0
        %436 = vmatprep.subr.mxu0 0.0
        %437 = vmatpush1.msra.mxu0 0.0
        %438 = vmatprep.subr.mxu0 0.0
        %439 = vmatpush1.msra.mxu0 0.0
        %440 = vmatprep.subr.mxu0 0.0
        %441 = vmatpush1.msra.mxu0 0.0
        %442 = vmatprep.subr.mxu0 0.0
        %443 = vmatpush1.msra.mxu0 0.0
        %444 = vmatprep.subr.mxu0 0.0
        %v445 = vand.u32 %v260, 4294901760
        %v446 = vsub.f32 %v260, %v445
        %447 = vmatpush1.msra.mxu0 %v446
        %448 = vmatprep.subr.mxu0 0.0
        %449 = vmatpush2.msra.mxu0 0.0
        %450 = vmatprep.subr.mxu0 0.0
        %451 = vmatpush2.msra.mxu0 0.0
        %452 = vmatprep.subr.mxu0 0.0
        %453 = vmatpush2.msra.mxu0 0.0
        %454 = vmatprep.subr.mxu0 0.0
        %455 = vmatpush2.msra.mxu0 0.0
        %456 = vmatprep.subr.mxu0 0.0
        %457 = vmatpush2.msra.mxu0 0.0
        %458 = vmatprep.subr.mxu0 0.0
        %459 = vmatpush2.msra.mxu0 0.0
        %460 = vmatprep.subr.mxu0 0.0
        %461 = vmatpush2.msra.mxu0 0.0
        %462 = vmatprep.subr.mxu0 0.0
        %463 = vmatpush2.msra.mxu0 0.0
        %464 = vmatprep.subr.mxu0 0.0
        %465 = vmatpush2.msra.mxu0 0.0
        %466 = vmatprep.subr.mxu0 0.0
        %467 = vmatpush2.msra.mxu0 0.0
        %468 = vmatprep.subr.mxu0 0.0
        %469 = vmatpush2.msra.mxu0 0.0
        %470 = vmatprep.subr.mxu0 0.0
        %471 = vmatpush2.msra.mxu0 0.0
        %472 = vmatprep.subr.mxu0 0.0
        %473 = vmatpush2.msra.mxu0 0.0
        %474 = vmatprep.subr.mxu0 0.0
        %475 = vmatpush2.msra.mxu0 0.0
        %476 = vmatprep.subr.mxu0 0.0
        %477 = vmatpush2.msra.mxu0 0.0
        %478 = vmatprep.subr.mxu0 0.0
        %479 = vmatpush2.msra.mxu0 0.0
        %480 = vmatprep.mubr.f32.mxu0 0.0
        %v481 = vand.u32 %v256, 4294901760
        %v482 = vsub.f32 %v256, %v481
        %483 = vmatmul.mubr.f32.gmra.mxu0 %v482
        %v484 = vpop.f32.mrf.mxu0
        %v485 = vadd.f32 %v411, %v484
        %v486 = vpop.f32.mrf.mxu0
        %487 = vdwg.mxu0
        %488 = vmatprep.subr.mxu0 0.0
        %489 = vmatpush1.msra.mxu0 0.0
        %490 = vmatprep.subr.mxu0 0.0
        %491 = vmatpush1.msra.mxu0 0.0
        %492 = vmatprep.subr.mxu0 0.0
        %493 = vmatpush1.msra.mxu0 0.0
        %494 = vmatprep.subr.mxu0 0.0
        %495 = vmatpush1.msra.mxu0 0.0
        %496 = vmatprep.subr.mxu0 0.0
        %497 = vmatpush1.msra.mxu0 0.0
        %498 = vmatprep.subr.mxu0 0.0
        %499 = vmatpush1.msra.mxu0 0.0
        %500 = vmatprep.subr.mxu0 0.0
        %501 = vmatpush1.msra.mxu0 0.0
        %502 = vmatprep.subr.mxu0 0.0
        %503 = vmatpush1.msra.mxu0 0.0
        %504 = vmatprep.subr.mxu0 0.0
        %505 = vmatpush1.msra.mxu0 0.0
        %506 = vmatprep.subr.mxu0 0.0
        %507 = vmatpush1.msra.mxu0 0.0
        %508 = vmatprep.subr.mxu0 0.0
        %509 = vmatpush1.msra.mxu0 0.0
        %510 = vmatprep.subr.mxu0 0.0
        %511 = vmatpush1.msra.mxu0 0.0
        %512 = vmatprep.subr.mxu0 0.0
        %513 = vmatpush1.msra.mxu0 0.0
        %514 = vmatprep.subr.mxu0 0.0
        %515 = vmatpush1.msra.mxu0 0.0
        %516 = vmatprep.subr.mxu0 0.0
        %517 = vmatpush1.msra.mxu0 0.0
        %518 = vmatprep.subr.mxu0 0.0
        %v519 = vand.u32 %v260, 4294901760
        %520 = vmatpush1.msra.mxu0 %v519
        %521 = vmatprep.subr.mxu0 0.0
        %522 = vmatpush2.msra.mxu0 0.0
        %523 = vmatprep.subr.mxu0 0.0
        %524 = vmatpush2.msra.mxu0 0.0
        %525 = vmatprep.subr.mxu0 0.0
        %526 = vmatpush2.msra.mxu0 0.0
        %527 = vmatprep.subr.mxu0 0.0
        %528 = vmatpush2.msra.mxu0 0.0
        %529 = vmatprep.subr.mxu0 0.0
        %530 = vmatpush2.msra.mxu0 0.0
        %531 = vmatprep.subr.mxu0 0.0
        %532 = vmatpush2.msra.mxu0 0.0
        %533 = vmatprep.subr.mxu0 0.0
        %534 = vmatpush2.msra.mxu0 0.0
        %535 = vmatprep.subr.mxu0 0.0
        %536 = vmatpush2.msra.mxu0 0.0
        %537 = vmatprep.subr.mxu0 0.0
        %538 = vmatpush2.msra.mxu0 0.0
        %539 = vmatprep.subr.mxu0 0.0
        %540 = vmatpush2.msra.mxu0 0.0
        %541 = vmatprep.subr.mxu0 0.0
        %542 = vmatpush2.msra.mxu0 0.0
        %543 = vmatprep.subr.mxu0 0.0
        %544 = vmatpush2.msra.mxu0 0.0
        %545 = vmatprep.subr.mxu0 0.0
        %546 = vmatpush2.msra.mxu0 0.0
        %547 = vmatprep.subr.mxu0 0.0
        %548 = vmatpush2.msra.mxu0 0.0
        %549 = vmatprep.subr.mxu0 0.0
        %550 = vmatpush2.msra.mxu0 0.0
        %551 = vmatprep.subr.mxu0 0.0
        %552 = vmatpush2.msra.mxu0 0.0
        %553 = vmatprep.mubr.f32.mxu0 0.0
        %v554 = vand.u32 %v256, 4294901760
        %v555 = vsub.f32 %v256, %v554
        %v556 = vand.u32 %v555, 4294901760
        %557 = vmatmul.mubr.f32.gmra.mxu0 %v556
        %v558 = vpop.f32.mrf.mxu0
        %v559 = vadd.f32 %v485, %v558
        %v560 = vpop.f32.mrf.mxu0
        %561 = vdwg.mxu0
        %562 = vmatprep.subr.mxu0 0.0
        %563 = vmatpush1.msra.mxu0 0.0
        %564 = vmatprep.subr.mxu0 0.0
        %565 = vmatpush1.msra.mxu0 0.0
        %566 = vmatprep.subr.mxu0 0.0
        %567 = vmatpush1.msra.mxu0 0.0
        %568 = vmatprep.subr.mxu0 0.0
        %569 = vmatpush1.msra.mxu0 0.0
        %570 = vmatprep.subr.mxu0 0.0
        %571 = vmatpush1.msra.mxu0 0.0
        %572 = vmatprep.subr.mxu0 0.0
        %573 = vmatpush1.msra.mxu0 0.0
        %574 = vmatprep.subr.mxu0 0.0
        %575 = vmatpush1.msra.mxu0 0.0
        %576 = vmatprep.subr.mxu0 0.0
        %577 = vmatpush1.msra.mxu0 0.0
        %578 = vmatprep.subr.mxu0 0.0
        %579 = vmatpush1.msra.mxu0 0.0
        %580 = vmatprep.subr.mxu0 0.0
        %581 = vmatpush1.msra.mxu0 0.0
        %582 = vmatprep.subr.mxu0 0.0
        %583 = vmatpush1.msra.mxu0 0.0
        %584 = vmatprep.subr.mxu0 0.0
        %585 = vmatpush1.msra.mxu0 0.0
        %586 = vmatprep.subr.mxu0 0.0
        %587 = vmatpush1.msra.mxu0 0.0
        %588 = vmatprep.subr.mxu0 0.0
        %589 = vmatpush1.msra.mxu0 0.0
        %590 = vmatprep.subr.mxu0 0.0
        %591 = vmatpush1.msra.mxu0 0.0
        %592 = vmatprep.subr.mxu0 0.0
        %v593 = vand.u32 %v260, 4294901760
        %v594 = vsub.f32 %v260, %v593
        %v595 = vand.u32 %v594, 4294901760
        %596 = vmatpush1.msra.mxu0 %v595
        %597 = vmatprep.subr.mxu0 0.0
        %598 = vmatpush2.msra.mxu0 0.0
        %599 = vmatprep.subr.mxu0 0.0
        %600 = vmatpush2.msra.mxu0 0.0
        %601 = vmatprep.subr.mxu0 0.0
        %602 = vmatpush2.msra.mxu0 0.0
        %603 = vmatprep.subr.mxu0 0.0
        %604 = vmatpush2.msra.mxu0 0.0
        %605 = vmatprep.subr.mxu0 0.0
        %606 = vmatpush2.msra.mxu0 0.0
        %607 = vmatprep.subr.mxu0 0.0
        %608 = vmatpush2.msra.mxu0 0.0
        %609 = vmatprep.subr.mxu0 0.0
        %610 = vmatpush2.msra.mxu0 0.0
        %611 = vmatprep.subr.mxu0 0.0
        %612 = vmatpush2.msra.mxu0 0.0
        %613 = vmatprep.subr.mxu0 0.0
        %614 = vmatpush2.msra.mxu0 0.0
        %615 = vmatprep.subr.mxu0 0.0
        %616 = vmatpush2.msra.mxu0 0.0
        %617 = vmatprep.subr.mxu0 0.0
        %618 = vmatpush2.msra.mxu0 0.0
        %619 = vmatprep.subr.mxu0 0.0
        %620 = vmatpush2.msra.mxu0 0.0
        %621 = vmatprep.subr.mxu0 0.0
        %622 = vmatpush2.msra.mxu0 0.0
        %623 = vmatprep.subr.mxu0 0.0
        %624 = vmatpush2.msra.mxu0 0.0
        %625 = vmatprep.subr.mxu0 0.0
        %626 = vmatpush2.msra.mxu0 0.0
        %627 = vmatprep.subr.mxu0 0.0
        %628 = vmatpush2.msra.mxu0 0.0
        %629 = vmatprep.mubr.f32.mxu0 0.0
        %v630 = vand.u32 %v256, 4294901760
        %631 = vmatmul.mubr.f32.gmra.mxu0 %v630
        %v632 = vpop.f32.mrf.mxu0
        %v633 = vadd.f32 %v559, %v632
        %v634 = vpop.f32.mrf.mxu0
        %635 = vdwg.mxu0
        %636 = vmatprep.subr.mxu0 0.0
        %637 = vmatpush1.msra.mxu0 0.0
        %638 = vmatprep.subr.mxu0 0.0
        %639 = vmatpush1.msra.mxu0 0.0
        %640 = vmatprep.subr.mxu0 0.0
        %641 = vmatpush1.msra.mxu0 0.0
        %642 = vmatprep.subr.mxu0 0.0
        %643 = vmatpush1.msra.mxu0 0.0
        %644 = vmatprep.subr.mxu0 0.0
        %645 = vmatpush1.msra.mxu0 0.0
        %646 = vmatprep.subr.mxu0 0.0
        %647 = vmatpush1.msra.mxu0 0.0
        %648 = vmatprep.subr.mxu0 0.0
        %649 = vmatpush1.msra.mxu0 0.0
        %650 = vmatprep.subr.mxu0 0.0
        %651 = vmatpush1.msra.mxu0 0.0
        %652 = vmatprep.subr.mxu0 0.0
        %653 = vmatpush1.msra.mxu0 0.0
        %654 = vmatprep.subr.mxu0 0.0
        %655 = vmatpush1.msra.mxu0 0.0
        %656 = vmatprep.subr.mxu0 0.0
        %657 = vmatpush1.msra.mxu0 0.0
        %658 = vmatprep.subr.mxu0 0.0
        %659 = vmatpush1.msra.mxu0 0.0
        %660 = vmatprep.subr.mxu0 0.0
        %661 = vmatpush1.msra.mxu0 0.0
        %662 = vmatprep.subr.mxu0 0.0
        %663 = vmatpush1.msra.mxu0 0.0
        %664 = vmatprep.subr.mxu0 0.0
        %665 = vmatpush1.msra.mxu0 0.0
        %666 = vmatprep.subr.mxu0 0.0
        %v667 = vand.u32 %v260, 4294901760
        %668 = vmatpush1.msra.mxu0 %v667
        %669 = vmatprep.subr.mxu0 0.0
        %670 = vmatpush2.msra.mxu0 0.0
        %671 = vmatprep.subr.mxu0 0.0
        %672 = vmatpush2.msra.mxu0 0.0
        %673 = vmatprep.subr.mxu0 0.0
        %674 = vmatpush2.msra.mxu0 0.0
        %675 = vmatprep.subr.mxu0 0.0
        %676 = vmatpush2.msra.mxu0 0.0
        %677 = vmatprep.subr.mxu0 0.0
        %678 = vmatpush2.msra.mxu0 0.0
        %679 = vmatprep.subr.mxu0 0.0
        %680 = vmatpush2.msra.mxu0 0.0
        %681 = vmatprep.subr.mxu0 0.0
        %682 = vmatpush2.msra.mxu0 0.0
        %683 = vmatprep.subr.mxu0 0.0
        %684 = vmatpush2.msra.mxu0 0.0
        %685 = vmatprep.subr.mxu0 0.0
        %686 = vmatpush2.msra.mxu0 0.0
        %687 = vmatprep.subr.mxu0 0.0
        %688 = vmatpush2.msra.mxu0 0.0
        %689 = vmatprep.subr.mxu0 0.0
        %690 = vmatpush2.msra.mxu0 0.0
        %691 = vmatprep.subr.mxu0 0.0
        %692 = vmatpush2.msra.mxu0 0.0
        %693 = vmatprep.subr.mxu0 0.0
        %694 = vmatpush2.msra.mxu0 0.0
        %695 = vmatprep.subr.mxu0 0.0
        %696 = vmatpush2.msra.mxu0 0.0
        %697 = vmatprep.subr.mxu0 0.0
        %698 = vmatpush2.msra.mxu0 0.0
        %699 = vmatprep.subr.mxu0 0.0
        %700 = vmatpush2.msra.mxu0 0.0
        %701 = vmatprep.mubr.f32.mxu0 0.0
        %v702 = vand.u32 %v256, 4294901760
        %703 = vmatmul.mubr.f32.gmra.mxu0 %v702
        %v704 = vpop.f32.mrf.mxu0
        %v705 = vadd.f32 %v633, %v704
        %v706 = vpop.f32.mrf.mxu0
        %707 = vdwg.mxu0
        %v708 = vld [vmem:[%s245] sm:$0xff]
        %v709 = vadd.f32 %v705, %v708
        %v710 = vmul.f32 %v709, 0.5
        %v711 = vmul.f32 %v709, 0.70710677
        %v712 = verf.f32.pop %v711
        %v713 = vadd.f32 %v712, 1.0
        %v714 = vmul.f32 %v710, %v713
        %vm715 = vcmask 130048
        %716 = vst.msk [vmem:[%s231] sm:$0xff] %vm715, %v714
        %s717 = sand.u32 %s138, 1
        %s718 = scalar_lea.sflag [#allocation3], %s717
        %s719 = sand.u32 %s138, 1
        %s720 = smul.addr %s719, 8
        %s721 = scalar_lea.vmem [#allocation2], %s720
        // Predicated region
        $region37: #{tpu_custom_call.1} parent=35 // pred_check
          %p722 = pneg %p148
        $region38: #{tpu_custom_call.1} parent=35 // pred_check_branch
          %724 = sbr.rel (%p722) target = $region40
        $region39: #{tpu_custom_call.1} parent=35 // pred_region
          %s726 = ssub.s32 128, 128
          %727 = vsyncadd %s718, %s726
          %s728 = sadd.s32 %s23, %s22
          %s729 = smul.addr %s728, 128
          %s730 = scalar_lea.hbm %s4, %s729
          %s732 = sshll.u32 %s721, 4
          %s733 = int_to_ptr.vmem [resolvable:$true] %s732
          %735 = dma.vmem_to_hbm [thread:$0]  %s733, 128, %s730, %s718
        $region40: #{tpu_custom_call.1} parent=35 // pred_fallthru
          _
      $region36: #{tpu_custom_call.1} parent=5 // pred_fallthru
        _
      %p736 = scmp.le.s32.totalorder 2, %s13
      // Predicated region
      $region41: #{tpu_custom_call.1} parent=5 // pred_check
        %p737 = pneg %p736
      $region42: #{tpu_custom_call.1} parent=5 // pred_check_branch
        %739 = sbr.rel (%p737) target = $region44
      $region43: #{tpu_custom_call.1} parent=5 // pred_region
        %s740 = ssub.s32 %s13, 2
        // Predicated region
        $region45: #{tpu_custom_call.1} parent=43 // pred_check
          %p741 = pneg %p154
        $region46: #{tpu_custom_call.1} parent=43 // pred_check_branch
          %743 = sbr.rel (%p741) target = $region48
        $region47: #{tpu_custom_call.1} parent=43 // pred_region
          %s744 = sand.u32 %s139, 1
          %s745 = scalar_lea.sflag [#allocation3], %s744
          %s746 = sand.u32 %s139, 1
          %s747 = smul.addr %s746, 8
          %s748 = scalar_lea.vmem [#allocation2], %s747
          %749 = dma.done %s745, 128
        $region48: #{tpu_custom_call.1} parent=43 // pred_fallthru
          _
      $region44: #{tpu_custom_call.1} parent=5 // pred_fallthru
        _
    $region6: #{tpu_custom_call.1} parent=1 // loop_footer
      %s17 = sadd.s32 1, %s13
    $region7: #{tpu_custom_call.1} parent=1 // loop_footer_branch
      %12 = sbr.rel target = $region3
    $region8: #{tpu_custom_call.1} parent=1 // loop_exit
      _
    %750 = vsyncpa [#allocation3], 1
    %s751 = scalar_lea.sflag [#allocation3], 1
    %752 = vsyncpa %s751, 1

</llo_original>
